<compile_context>
chip_gen: v5e
topology: v5e:2x2
jax: 0.10.0
libtpu: 0.0.40
codegen_flags: <defaults>
</compile_context>

<pallas_src>
import jax
import jax.numpy as jnp
from jax.experimental import pallas as pl
from jax.experimental.pallas import tpu as pltpu

_LANES = 128


def _single_variance_kernel(var_ref, out_ref):
    # var_ref: SMEM ref of shape (1,) float32   (variance[0])
    # out_ref: VMEM ref of shape (tile_rows, 128) float32 -- lane-dense slab
    s = jnp.exp(var_ref[0] * 10.0)
    out_ref[...] = jnp.full(out_ref.shape, s, dtype=out_ref.dtype)


def single_variance_forward(x, variance, *, tile_rows=2048):
    """Pallas implementation of SingleVarianceNetwork.forward.

    x:        [N, ...] array (only its leading dim is used, like len(x) in torch)
    variance: [120] float32 parameter vector (only element 0 is used)
    returns:  [N, 1] float32
    """
    n = x.shape[0]

    # Number of 128-lane rows needed to hold N scalars.
    rows = pl.cdiv(n, _LANES)

    if rows <= tile_rows:
        # Single block covering the whole slab: block_shape == full array dims,
        # which satisfies the (8,128)/full-dim BlockSpec rule for any `rows`.
        tile_rows = rows
        padded_rows = rows
    else:
        # Multi-block: row-tile must be a multiple of 8; pad the slab so there
        # is no partial last block.
        tile_rows = max(8, (tile_rows // 8) * 8)
        padded_rows = ((rows + tile_rows - 1) // tile_rows) * tile_rows

    grid = (padded_rows // tile_rows,)

    # Double-buffered output tile + headroom; tiny and N-independent.
    tile_bytes = tile_rows * _LANES * 4
    vmem_limit_bytes = max(2 * tile_bytes + (1 << 20), 2 << 20)

    # Only the scalar we actually need goes to SMEM.
    var0 = variance[:1].astype(jnp.float32)

    slab = pl.pallas_call(
        _single_variance_kernel,
        out_shape=jax.ShapeDtypeStruct((padded_rows, _LANES), jnp.float32),
        grid_spec=pltpu.PrefetchScalarGridSpec(
            num_scalar_prefetch=0,
            grid=grid,
            in_specs=[
                # variance scalar: SMEM, untiled.
                pl.BlockSpec(memory_space=pltpu.SMEM),
            ],
            out_specs=pl.BlockSpec((tile_rows, _LANES), lambda i: (i, 0)),
        ),
        compiler_params=pltpu.CompilerParams(
            dimension_semantics=("parallel",),
            vmem_limit_bytes=vmem_limit_bytes,
        ),
    )(var0)

    total = padded_rows * _LANES
    if total == n:
        # Contiguous row-major (rows,128) -> (N,1) is a layout-preserving
        # reshape: no extra HBM copy.
        return slab.reshape(n, 1)
    # Drop padded tail elements (single small slice copy).
    return slab.reshape(-1)[:n].reshape(n, 1)


if __name__ == "__main__":
    key = jax.random.PRNGKey(0)

    # Deterministic parameter init, mirroring __init__(init_val):
    #   variance = full(120, init_val)
    init_val = 0.3
    variance = jnp.full((120,), init_val, dtype=jnp.float32)

    # Example input: N=16 points with D=3 coordinates (only len(x) matters).
    n, d = 16, 3
    x = jax.random.normal(key, (n, d), dtype=jnp.float32)

    out = single_variance_forward(x, variance)
    out = jax.block_until_ready(out)

    # Reference check against the pure-JAX equivalent of the torch forward.
    ref = jnp.ones((n, 1), jnp.float32) * jnp.exp(variance[0] * 10.0)
    assert out.shape == (n, 1), out.shape
    assert jnp.allclose(out, ref, rtol=1e-6, atol=1e-6), (out, ref)

    # Exactly-divisible batch (exercises the bitcast fast path).
    n1 = 4 * 128
    out1 = jax.block_until_ready(
        single_variance_forward(jnp.zeros((n1, d), jnp.float32), variance))
    assert out1.shape == (n1, 1), out1.shape
    assert jnp.allclose(out1, jnp.exp(variance[0] * 10.0), rtol=1e-6, atol=1e-6)

    # Larger, non-multiple-of-128 batch that exercises the multi-block /
    # padded path (3 full tiles of 2048 rows + a remainder).
    n2 = 3 * 2048 * 128 + 77
    out2 = jax.block_until_ready(
        single_variance_forward(jnp.zeros((n2, d), jnp.float32), variance))
    assert out2.shape == (n2, 1), out2.shape
    assert jnp.allclose(out2, jnp.exp(variance[0] * 10.0), rtol=1e-6, atol=1e-6)

    print("KERNEL_OK")
</pallas_src>

<mosaic_0001>
module attributes {stable_mosaic.version = 11 : i64} {
  func.func @_single_variance_kernel(%arg0: i32, %arg1: memref<1xf32, #tpu.memory_space<smem>>, %arg2: memref<1x128xf32, #tpu.memory_space<vmem>>) attributes {dimension_semantics = [#tpu.dimension_semantics<parallel>], iteration_bounds = array<i64: 1>, scalar_prefetch = 0 : i64, scratch_operands = 0 : i64, tpu.core_type = #tpu.core_type<tc>, window_params = [{transform_indices = @transform_0, window_bounds = array<i64: 1>}, {transform_indices = @transform_1, window_bounds = array<i64: 1, 128>}]} {
    %c0 = arith.constant 0 : index
    %0 = memref.load %arg1[%c0] : memref<1xf32, #tpu.memory_space<smem>>
    %cst = arith.constant 1.000000e+01 : f32
    %1 = arith.mulf %0, %cst : f32
    %2 = math.exp %1 : f32
    %3 = vector.broadcast %2 : f32 to vector<1x128xf32>
    %c0_0 = arith.constant 0 : index
    %c0_1 = arith.constant 0 : index
    %4 = vector.load %arg2[%c0_0, %c0_1] : memref<1x128xf32, #tpu.memory_space<vmem>>, vector<1x128xf32>
    tpu.vector_store %arg2[%c0_0, %c0_1], %3 {strides = array<i32>} : memref<1x128xf32, #tpu.memory_space<vmem>>, vector<1x128xf32>,
    return
  }
  func.func @transform_0(%arg0: i32) -> i32 {
    %c0_i32 = arith.constant 0 : i32
    %c0_i32_0 = arith.constant 0 : i32
    return %c0_i32 : i32
  }
  func.func @transform_1(%arg0: i32) -> (i32, i32) {
    %c0_i32 = arith.constant 0 : i32
    %c0_i32_0 = arith.constant 0 : i32
    return %arg0, %c0_i32 : i32, i32
  }
}

</mosaic_0001>

<llo_original>
// kernel: tpu_custom_call.1
$region0: #{tpu_custom_call.1}
  #allocation0 [shape = 'u32[]', space=smem, size = 0x4, offset = 0x4, fixed_abs, tag = 'smem constant byte address 0x4 - core index']
  #allocation1 [shape = 'u32[72,128]{1,0:T(1,128)}', space=vmem, size = 0x9000, scoped, tag = 'internal scratch']
  #allocation2 [shape = 'f32[1]{0:T(128)S(6)}', space=smem, size = 0x200, scoped, tag = 'scoped memory for tpu_custom_call.1']
  %s0 = inlined_call_operand.<no memory space> [shape: f32[1], index: 0, kind: input, shape index: {}]
  %s1 = inlined_call_operand.hbm [shape: f32[1,128], index: 1, kind: output, shape index: {}]
  %s2 = sld [smem:[#allocation0]]
  $region14: #{tpu_custom_call.1} parent=0
    _
  %s4 = ssub.s32 1, %s2
  %s5 = scalar_select 0, %s4, %s2
  %6 = sst [smem:[#allocation2]] %s0
  $region1: #{tpu_custom_call.1} parent=0
    #allocation3 [shape = 'u8[512]{0}', space=vmem, size = 0x400, scoped, tag = 'output window, operand 0, single buffered']
    #allocation4 [shape = 's32[1]{0}', space=sflag, size = 0x4, scoped, tag = 'scoped memory for tpu_custom_call.1']
    %7 = vsyncpa [#allocation4], 0
    // Predicated region
    $region2: #{tpu_custom_call.1} parent=1 // pred_check
      _
    $region3: #{tpu_custom_call.1} parent=1 // pred_check_branch
      %9 = sbr.rel (0) target = $region5
    $region4: #{tpu_custom_call.1} parent=1 // pred_region
      _
    $region5: #{tpu_custom_call.1} parent=1 // pred_fallthru
      _
    %s10 = sld [smem:[#allocation2]]
    %s11 = smul.f32 %s10, 10.0
    %v12 = vstv %s11
    %v13 = vmul.f32 %v12, 1.442695
    %v14 = vpow.pop %v13
    %s15 = vtos %v14
    %v16 = vstv %s15
    %17 = vst [vmem:[#allocation3] sm:$0x1] %v16
    // Predicated region
    $region6: #{tpu_custom_call.1} parent=1 // pred_check
      _
    $region7: #{tpu_custom_call.1} parent=1 // pred_check_branch
      %19 = sbr.rel (0) target = $region9
    $region8: #{tpu_custom_call.1} parent=1 // pred_region
      %21 = vsyncadd [#allocation4], 0
      %s23 = sshll.u32 [#allocation3], 4
      %s24 = int_to_ptr.vmem [resolvable:$true] %s23
      %s25 = sshll.u32 %s1, 4
      %s26 = int_to_ptr.hbm [resolvable:$true] %s25
      %28 = dma.vmem_to_hbm [thread:$0]  %s24, 16, %s26, [#allocation4]
    $region9: #{tpu_custom_call.1} parent=1 // pred_fallthru
      _
    // Predicated region
    $region10: #{tpu_custom_call.1} parent=1 // pred_check
      _
    $region11: #{tpu_custom_call.1} parent=1 // pred_check_branch
      %30 = sbr.rel (0) target = $region13
    $region12: #{tpu_custom_call.1} parent=1 // pred_region
      %32 = dma.done [#allocation4], 16
    $region13: #{tpu_custom_call.1} parent=1 // pred_fallthru
      _
    %33 = vsyncpa [#allocation4], 1

</llo_original>
